<compile_context>
chip_gen: v6e
topology: v6e:2x2x1
jax: 0.10.0
libtpu: 0.0.40
codegen_flags: <defaults>
</compile_context>

<pallas_src>
import functools

import jax
import jax.numpy as jnp
from jax.experimental import pallas as pl
from jax.experimental.pallas import tpu as pltpu


def _round_up(n, m):
    return ((n + m - 1) // m) * m


# ---------------------------------------------------------------------------
# Kernel
# ---------------------------------------------------------------------------
def _ppo_agent_kernel(
    action_dim,
    state_ref,                 # (TB, SP)   bf16  (SP = state_dim rounded to 16, NOT 128)
    w_sh_ref, b_sh_ref,        # shared trunk: (SP, HP) bf16, (1, HP) f32
    w_h1_ref, b_h1_ref,        # fused [log_std L1 | critic L1] -> lanes [H, 2H): (HP, HP) bf16, (1, HP) f32
    w_out_ref, b_out_ref,      # single fused output weight/bias: (HP, OUT) bf16, (1, OUT) f32
    out_ref,                   # (TB, OUT) f32 slab: [mean | std | value | pad]
):
    x = state_ref[...]

    # shared trunk: Linear + Tanh (f32 accumulation / activation).
    # h32 is nonzero only in lanes [0, hidden_dim).
    h32 = jnp.tanh(
        jnp.dot(x, w_sh_ref[...], preferred_element_type=jnp.float32)
        + b_sh_ref[...]
    )
    h = h32.astype(jnp.bfloat16)

    # fused first-stage heads: relu(h @ [0 | W_ls1 | W_v1] + [0 | b_ls1 | b_v1]).
    # hh32 is nonzero only in lanes [hidden_dim, 2*hidden_dim).
    hh32 = jnp.maximum(
        jnp.dot(h, w_h1_ref[...], preferred_element_type=jnp.float32)
        + b_h1_ref[...],
        0.0,
    )

    # lane-packed activation: trunk h in lanes [0,H), head hidden in [H,2H).
    # Disjoint nonzero lanes -> the add is an exact merge.
    packed = (h32 + hh32).astype(jnp.bfloat16)

    # ONE output matmul produces the whole slab:
    #   lanes [0, A)   mean   (rows [0,H)    = W_mu)
    #   lanes [A, 2A)  log_std(rows [H,H+H/2)= W_ls2)
    #   lane  [2A]     value  (rows [H+H/2,2H)= W_v2)
    slab = (
        jnp.dot(packed, w_out_ref[...], preferred_element_type=jnp.float32)
        + b_out_ref[...]
    )

    # std lanes get exp(clip(., -5, 2)); everything else passes through.
    lane = jax.lax.broadcasted_iota(jnp.int32, slab.shape, dimension=1)
    is_std = jnp.logical_and(lane >= action_dim, lane < 2 * action_dim)
    out_ref[...] = jnp.where(is_std, jnp.exp(jnp.clip(slab, -5.0, 2.0)), slab)


# ---------------------------------------------------------------------------
# Wrapper
# ---------------------------------------------------------------------------
@functools.partial(jax.jit, static_argnames=("action_dim",))
def ppo_agent_forward(state, packed_params, *, action_dim):
    B, state_dim = state.shape
    w_sh = packed_params[0]
    SP, HP = w_sh.shape
    OUT = packed_params[-1].shape[-1]

    # Batch tiling:
    #   * multiples of 16 rows (bf16 packs 16 sublanes per vreg),
    #   * tile cap 1024 to amortize ~0.35us per grid step,
    #   * aim for >= 2 grid steps whenever the batch allows it so the
    #     "parallel" batch axis can shard across v7x's two TensorCores.
    B16 = _round_up(B, 16)
    TB = min(1024, _round_up(max(B16 // 2, 16), 16))
    B_pad = _round_up(B16, TB)
    n_tiles = B_pad // TB

    # pad batch (and feature dim to SP) + cast matmul operand to bf16.
    # No 128-lane padding of the state: the BlockSpec uses the full SP extent.
    if B_pad == B and SP == state_dim:
        x = state.astype(jnp.bfloat16)
    else:
        x = jnp.zeros((B_pad, SP), jnp.bfloat16)
        x = x.at[:B, :state_dim].set(state.astype(jnp.bfloat16))

    flops = 2 * B_pad * (SP * HP + HP * HP + HP * OUT)
    transcendentals = B_pad * (HP + OUT)           # tanh + exp
    bytes_accessed = (
        B_pad * SP * 2
        + sum(int(p.size) * p.dtype.itemsize for p in packed_params)
        + B_pad * OUT * 4
    )

    slab = pl.pallas_call(
        functools.partial(_ppo_agent_kernel, action_dim),
        out_shape=jax.ShapeDtypeStruct((B_pad, OUT), jnp.float32),
        grid_spec=pltpu.PrefetchScalarGridSpec(
            num_scalar_prefetch=0,
            grid=(n_tiles,),
            in_specs=[pl.BlockSpec((TB, SP), lambda i: (i, 0))]
            + [pl.BlockSpec(p.shape, lambda i: (0, 0)) for p in packed_params],
            out_specs=pl.BlockSpec((TB, OUT), lambda i: (i, 0)),
        ),
        compiler_params=pltpu.CompilerParams(
            dimension_semantics=("parallel",),
        ),
        cost_estimate=pl.CostEstimate(
            flops=flops,
            transcendentals=transcendentals,
            bytes_accessed=bytes_accessed,
        ),
    )(x, *packed_params)

    # NOTE: slicing happens inside this jit, so XLA fuses it with the kernel's
    # epilogue; RL consumers that sample immediately can instead take `slab`
    # directly and slice at the point of use to avoid extra tiny HBM reads.
    mean = slab[:B, :action_dim]
    std = slab[:B, action_dim:2 * action_dim]
    value = slab[:B, 2 * action_dim:2 * action_dim + 1]
    return mean, std, value


# ---------------------------------------------------------------------------
# Parameters (PyTorch-style init), then fused + padded + bf16 packing
# ---------------------------------------------------------------------------
def _linear_params(key, fan_in, fan_out):
    """uniform(-1/sqrt(fan_in), 1/sqrt(fan_in)); W pre-transposed (in, out)."""
    kw, kb = jax.random.split(key)
    bound = 1.0 / jnp.sqrt(jnp.float32(fan_in))
    w = jax.random.uniform(kw, (fan_in, fan_out), jnp.float32, -bound, bound)
    b = jax.random.uniform(kb, (1, fan_out), jnp.float32, -bound, bound)
    return w, b


def make_params(key, state_dim, hidden_dim, action_dim):
    ks = jax.random.split(key, 6)
    w_sh, b_sh = _linear_params(ks[0], state_dim, hidden_dim)          # shared trunk
    w_mu, b_mu = _linear_params(ks[1], hidden_dim, action_dim)         # actor_mean
    w_ls1, b_ls1 = _linear_params(ks[2], hidden_dim, hidden_dim // 2)  # actor_log_std L1
    w_ls2, b_ls2 = _linear_params(ks[3], hidden_dim // 2, action_dim)  # actor_log_std L2
    w_v1, b_v1 = _linear_params(ks[4], hidden_dim, hidden_dim // 2)    # critic L1
    w_v2, b_v2 = _linear_params(ks[5], hidden_dim // 2, 1)             # critic L2
    return (w_sh, b_sh, w_mu, b_mu, w_ls1, b_ls1, w_ls2, b_ls2,
            w_v1, b_v1, w_v2, b_v2)


def pack_params(params, state_dim, hidden_dim, action_dim):
    """Pad, lane-pack the head activations, fuse all output heads into ONE
    (HP, OUT) matmul weight, and cast matmul weights to bf16."""
    (w_sh, b_sh, w_mu, b_mu, w_ls1, b_ls1, w_ls2, b_ls2,
     w_v1, b_v1, w_v2, b_v2) = params
    A = action_dim
    assert hidden_dim % 2 == 0, "hidden_dim must be even (hidden_dim//2 heads)"
    half = hidden_dim // 2
    SP = _round_up(state_dim, 16)            # state lane dim (full-extent BlockSpec)
    HP = _round_up(hidden_dim, 128)
    OUT = _round_up(2 * A + 1, 128)
    assert 2 * hidden_dim <= HP, (
        "lane-packing fusion needs 2*hidden_dim <= round_up(hidden_dim,128); "
        "TODO(synk): implement the (TB, 2*HP) concat / K=256 matmul fallback")
    assert 2 * A + 1 <= OUT

    w_sh_p = jnp.zeros((SP, HP), jnp.float32).at[:state_dim, :hidden_dim].set(w_sh)
    b_sh_p = jnp.zeros((1, HP), jnp.float32).at[:, :hidden_dim].set(b_sh)

    # fused first-stage heads, outputs placed in lanes [H, H+half) / [H+half, 2H)
    # so the ReLU output is disjoint from the trunk activation lanes [0, H).
    w_h1_p = (jnp.zeros((HP, HP), jnp.float32)
              .at[:hidden_dim, hidden_dim:hidden_dim + half].set(w_ls1)
              .at[:hidden_dim, hidden_dim + half:2 * hidden_dim].set(w_v1))
    b_h1_p = (jnp.zeros((1, HP), jnp.float32)
              .at[:, hidden_dim:hidden_dim + half].set(b_ls1)
              .at[:, hidden_dim + half:2 * hidden_dim].set(b_v1))

    # single fused output weight:
    #   rows [0, H)            x cols [0, A)        -> actor_mean
    #   rows [H, H+half)       x cols [A, 2A)       -> actor_log_std L2
    #   rows [H+half, 2H)      x cols [2A, 2A+1)    -> critic L2
    w_out_p = (jnp.zeros((HP, OUT), jnp.float32)
               .at[:hidden_dim, :A].set(w_mu)
               .at[hidden_dim:hidden_dim + half, A:2 * A].set(w_ls2)
               .at[hidden_dim + half:2 * hidden_dim, 2 * A:2 * A + 1].set(w_v2))

    b_out_p = (jnp.zeros((1, OUT), jnp.float32)
               .at[:, :A].set(b_mu)
               .at[:, A:2 * A].set(b_ls2)
               .at[:, 2 * A:2 * A + 1].set(b_v2))

    return (
        w_sh_p.astype(jnp.bfloat16), b_sh_p,
        w_h1_p.astype(jnp.bfloat16), b_h1_p,
        w_out_p.astype(jnp.bfloat16), b_out_p,
    )


# ---------------------------------------------------------------------------
# References
# ---------------------------------------------------------------------------
def reference_forward_packed(state, packed, state_dim, action_dim):
    """Same math as the kernel (bf16 operands, f32 accumulation), pure JAX."""
    w_sh, b_sh, w_h1, b_h1, w_out, b_out = packed
    SP = w_sh.shape[0]
    B = state.shape[0]
    A = action_dim
    x = jnp.zeros((B, SP), jnp.bfloat16).at[:, :state_dim].set(
        state.astype(jnp.bfloat16))
    h32 = jnp.tanh(jnp.dot(x, w_sh, preferred_element_type=jnp.float32) + b_sh)
    h = h32.astype(jnp.bfloat16)
    hh32 = jnp.maximum(
        jnp.dot(h, w_h1, preferred_element_type=jnp.float32) + b_h1, 0.0)
    packed_act = (h32 + hh32).astype(jnp.bfloat16)
    slab = jnp.dot(packed_act, w_out, preferred_element_type=jnp.float32) + b_out
    mean = slab[:, :A]
    std = jnp.exp(jnp.clip(slab[:, A:2 * A], -5.0, 2.0))
    value = slab[:, 2 * A:2 * A + 1]
    return mean, std, value


def reference_forward_f32(state, params):
    """Original full-precision, unfused semantics."""
    (w_sh, b_sh, w_mu, b_mu, w_ls1, b_ls1, w_ls2, b_ls2,
     w_v1, b_v1, w_v2, b_v2) = params
    h = jnp.tanh(state @ w_sh + b_sh)
    mean = h @ w_mu + b_mu
    hs = jnp.maximum(h @ w_ls1 + b_ls1, 0.0)
    std = jnp.exp(jnp.clip(hs @ w_ls2 + b_ls2, -5.0, 2.0))
    hv = jnp.maximum(h @ w_v1 + b_v1, 0.0)
    value = hv @ w_v2 + b_v2
    return mean, std, value


if __name__ == "__main__":
    B, STATE_DIM, HIDDEN_DIM, ACTION_DIM = 8, 16, 64, 4

    key = jax.random.PRNGKey(0)
    k_state, k_params = jax.random.split(key)
    state = jax.random.normal(k_state, (B, STATE_DIM), jnp.float32)
    params = make_params(k_params, STATE_DIM, HIDDEN_DIM, ACTION_DIM)
    packed = pack_params(params, STATE_DIM, HIDDEN_DIM, ACTION_DIM)

    mean, std, value = ppo_agent_forward(state, packed, action_dim=ACTION_DIM)
    jax.block_until_ready((mean, std, value))

    assert mean.shape == (B, ACTION_DIM)
    assert std.shape == (B, ACTION_DIM)
    assert value.shape == (B, 1)

    # exact-math check (same bf16-operand / f32-accumulate recipe as kernel)
    rm, rs, rv = reference_forward_packed(state, packed, STATE_DIM, ACTION_DIM)
    assert jnp.allclose(mean, rm, atol=2e-2, rtol=2e-2)
    assert jnp.allclose(std, rs, atol=2e-2, rtol=2e-2)
    assert jnp.allclose(value, rv, atol=2e-2, rtol=2e-2)

    # loose check against full-f32 original semantics (bf16 weight rounding)
    fm, fs, fv = reference_forward_f32(state, params)
    assert jnp.allclose(mean, fm, atol=1e-1, rtol=1e-1)
    assert jnp.allclose(std, fs, atol=1e-1, rtol=1e-1)
    assert jnp.allclose(value, fv, atol=1e-1, rtol=1e-1)

    print("KERNEL_OK")
</pallas_src>

<mosaic_0001>
module attributes {stable_mosaic.version = 11 : i64} {
  func.func @_ppo_agent_kernel(%arg0: i32, %arg1: memref<16x16xbf16, #tpu.memory_space<vmem>>, %arg2: memref<16x128xbf16, #tpu.memory_space<vmem>>, %arg3: memref<1x128xf32, #tpu.memory_space<vmem>>, %arg4: memref<128x128xbf16, #tpu.memory_space<vmem>>, %arg5: memref<1x128xf32, #tpu.memory_space<vmem>>, %arg6: memref<128x128xbf16, #tpu.memory_space<vmem>>, %arg7: memref<1x128xf32, #tpu.memory_space<vmem>>, %arg8: memref<16x128xf32, #tpu.memory_space<vmem>>) attributes {dimension_semantics = [#tpu.dimension_semantics<parallel>], iteration_bounds = array<i64: 1>, scalar_prefetch = 0 : i64, scratch_operands = 0 : i64, tpu.core_type = #tpu.core_type<tc>, window_params = [{transform_indices = @transform_0, window_bounds = array<i64: 16, 16>}, {pipeline_mode = #tpu.pipeline_mode<synchronous>, transform_indices = @transform_1, window_bounds = array<i64: 16, 128>}, {pipeline_mode = #tpu.pipeline_mode<synchronous>, transform_indices = @transform_2, window_bounds = array<i64: 1, 128>}, {pipeline_mode = #tpu.pipeline_mode<synchronous>, transform_indices = @transform_3, window_bounds = array<i64: 128, 128>}, {pipeline_mode = #tpu.pipeline_mode<synchronous>, transform_indices = @transform_4, window_bounds = array<i64: 1, 128>}, {pipeline_mode = #tpu.pipeline_mode<synchronous>, transform_indices = @transform_5, window_bounds = array<i64: 128, 128>}, {pipeline_mode = #tpu.pipeline_mode<synchronous>, transform_indices = @transform_6, window_bounds = array<i64: 1, 128>}, {transform_indices = @transform_7, window_bounds = array<i64: 16, 128>}]} {
    %c0 = arith.constant 0 : index
    %c0_0 = arith.constant 0 : index
    %0 = vector.load %arg1[%c0, %c0_0] : memref<16x16xbf16, #tpu.memory_space<vmem>>, vector<16x16xbf16>
    %c0_1 = arith.constant 0 : index
    %c0_2 = arith.constant 0 : index
    %1 = vector.load %arg2[%c0_1, %c0_2] : memref<16x128xbf16, #tpu.memory_space<vmem>>, vector<16x128xbf16>
    %cst = arith.constant dense<0.000000e+00> : vector<16x128xf32>
    %2 = tpu.matmul %0, %1, %cst {dimension_numbers = #tpu.dot_dimension_numbers<[1], [0], [0], [1], [0, 0, 1, 1], [], []>} : vector<16x16xbf16>, vector<16x128xbf16>, vector<16x128xf32> -> vector<16x128xf32>
    %c0_3 = arith.constant 0 : index
    %c0_4 = arith.constant 0 : index
    %3 = vector.load %arg3[%c0_3, %c0_4] : memref<1x128xf32, #tpu.memory_space<vmem>>, vector<1x128xf32>
    %4 = vector.broadcast %3 : vector<1x128xf32> to vector<16x128xf32>
    %5 = arith.addf %2, %4 : vector<16x128xf32>
    %6 = math.tanh %5 : vector<16x128xf32>
    %7 = arith.truncf %6 : vector<16x128xf32> to vector<16x128xbf16>
    %c0_5 = arith.constant 0 : index
    %c0_6 = arith.constant 0 : index
    %8 = vector.load %arg4[%c0_5, %c0_6] : memref<128x128xbf16, #tpu.memory_space<vmem>>, vector<128x128xbf16>
    %cst_7 = arith.constant dense<0.000000e+00> : vector<16x128xf32>
    %9 = tpu.matmul %7, %8, %cst_7 {dimension_numbers = #tpu.dot_dimension_numbers<[1], [0], [0], [1], [0, 0, 1, 1], [], []>} : vector<16x128xbf16>, vector<128x128xbf16>, vector<16x128xf32> -> vector<16x128xf32>
    %c0_8 = arith.constant 0 : index
    %c0_9 = arith.constant 0 : index
    %10 = vector.load %arg5[%c0_8, %c0_9] : memref<1x128xf32, #tpu.memory_space<vmem>>, vector<1x128xf32>
    %11 = vector.broadcast %10 : vector<1x128xf32> to vector<16x128xf32>
    %12 = arith.addf %9, %11 : vector<16x128xf32>
    %cst_10 = arith.constant 0.000000e+00 : f32
    %13 = vector.broadcast %cst_10 : f32 to vector<16x128xf32>
    %14 = arith.maximumf %12, %13 : vector<16x128xf32>
    %15 = arith.addf %6, %14 : vector<16x128xf32>
    %16 = arith.truncf %15 : vector<16x128xf32> to vector<16x128xbf16>
    %c0_11 = arith.constant 0 : index
    %c0_12 = arith.constant 0 : index
    %17 = vector.load %arg6[%c0_11, %c0_12] : memref<128x128xbf16, #tpu.memory_space<vmem>>, vector<128x128xbf16>
    %cst_13 = arith.constant dense<0.000000e+00> : vector<16x128xf32>
    %18 = tpu.matmul %16, %17, %cst_13 {dimension_numbers = #tpu.dot_dimension_numbers<[1], [0], [0], [1], [0, 0, 1, 1], [], []>} : vector<16x128xbf16>, vector<128x128xbf16>, vector<16x128xf32> -> vector<16x128xf32>
    %c0_14 = arith.constant 0 : index
    %c0_15 = arith.constant 0 : index
    %19 = vector.load %arg7[%c0_14, %c0_15] : memref<1x128xf32, #tpu.memory_space<vmem>>, vector<1x128xf32>
    %20 = vector.broadcast %19 : vector<1x128xf32> to vector<16x128xf32>
    %21 = arith.addf %18, %20 : vector<16x128xf32>
    %22 = tpu.iota {dimensions = array<i32: 1>} : vector<16x128xi32>
    %c4_i32 = arith.constant 4 : i32
    %23 = vector.broadcast %c4_i32 : i32 to vector<16x128xi32>
    %24 = arith.cmpi sge, %22, %23 : vector<16x128xi32>
    %c8_i32 = arith.constant 8 : i32
    %25 = vector.broadcast %c8_i32 : i32 to vector<16x128xi32>
    %26 = arith.cmpi slt, %22, %25 : vector<16x128xi32>
    %27 = arith.andi %24, %26 : vector<16x128xi1>
    %cst_16 = arith.constant -5.000000e+00 : f32
    %cst_17 = arith.constant 2.000000e+00 : f32
    %28 = vector.broadcast %cst_16 : f32 to vector<16x128xf32>
    %29 = arith.maximumf %28, %21 : vector<16x128xf32>
    %30 = vector.broadcast %cst_17 : f32 to vector<16x128xf32>
    %31 = arith.minimumf %30, %29 : vector<16x128xf32>
    %32 = math.exp %31 : vector<16x128xf32>
    %33 = arith.select %27, %32, %21 : vector<16x128xi1>, vector<16x128xf32>
    %c0_18 = arith.constant 0 : index
    %c0_19 = arith.constant 0 : index
    %34 = vector.load %arg8[%c0_18, %c0_19] : memref<16x128xf32, #tpu.memory_space<vmem>>, vector<16x128xf32>
    tpu.vector_store %arg8[%c0_18, %c0_19], %33 {strides = array<i32>} : memref<16x128xf32, #tpu.memory_space<vmem>>, vector<16x128xf32>,
    return
  }
  func.func @transform_0(%arg0: i32) -> (i32, i32) {
    %c0_i32 = arith.constant 0 : i32
    %c0_i32_0 = arith.constant 0 : i32
    return %arg0, %c0_i32 : i32, i32
  }
  func.func @transform_1(%arg0: i32) -> (i32, i32) {
    %c0_i32 = arith.constant 0 : i32
    %c0_i32_0 = arith.constant 0 : i32
    %c0_i32_1 = arith.constant 0 : i32
    return %c0_i32, %c0_i32_0 : i32, i32
  }
  func.func @transform_2(%arg0: i32) -> (i32, i32) {
    %c0_i32 = arith.constant 0 : i32
    %c0_i32_0 = arith.constant 0 : i32
    %c0_i32_1 = arith.constant 0 : i32
    return %c0_i32, %c0_i32_0 : i32, i32
  }
  func.func @transform_3(%arg0: i32) -> (i32, i32) {
    %c0_i32 = arith.constant 0 : i32
    %c0_i32_0 = arith.constant 0 : i32
    %c0_i32_1 = arith.constant 0 : i32
    return %c0_i32, %c0_i32_0 : i32, i32
  }
  func.func @transform_4(%arg0: i32) -> (i32, i32) {
    %c0_i32 = arith.constant 0 : i32
    %c0_i32_0 = arith.constant 0 : i32
    %c0_i32_1 = arith.constant 0 : i32
    return %c0_i32, %c0_i32_0 : i32, i32
  }
  func.func @transform_5(%arg0: i32) -> (i32, i32) {
    %c0_i32 = arith.constant 0 : i32
    %c0_i32_0 = arith.constant 0 : i32
    %c0_i32_1 = arith.constant 0 : i32
    return %c0_i32, %c0_i32_0 : i32, i32
  }
  func.func @transform_6(%arg0: i32) -> (i32, i32) {
    %c0_i32 = arith.constant 0 : i32
    %c0_i32_0 = arith.constant 0 : i32
    %c0_i32_1 = arith.constant 0 : i32
    return %c0_i32, %c0_i32_0 : i32, i32
  }
  func.func @transform_7(%arg0: i32) -> (i32, i32) {
    %c0_i32 = arith.constant 0 : i32
    %c0_i32_0 = arith.constant 0 : i32
    return %arg0, %c0_i32 : i32, i32
  }
}

</mosaic_0001>

<llo_original>
// kernel: ppo_agent_forward.1
$region0: #{ppo_agent_forward.1}
  #allocation0 [shape = 'u32[]', space=smem, size = 0x4, offset = 0x4, fixed_abs, tag = 'smem constant byte address 0x4 - core index']
  #allocation1 [shape = 'u32[144,128]{1,0:T(1,128)}', space=vmem, size = 0x12000, scoped, tag = 'internal scratch']
  %s0 = inlined_call_operand.vmem [shape: bf16[16,16], index: 0, kind: input, shape index: {}]
  %s1 = inlined_call_operand.vmem [shape: bf16[16,128], index: 1, kind: input, shape index: {}]
  %s2 = inlined_call_operand.vmem [shape: f32[1,128], index: 2, kind: input, shape index: {}]
  %s3 = inlined_call_operand.hbm [shape: bf16[128,128], index: 3, kind: input, shape index: {}]
  %s4 = inlined_call_operand.vmem [shape: f32[1,128], index: 4, kind: input, shape index: {}]
  %s5 = inlined_call_operand.hbm [shape: bf16[128,128], index: 5, kind: input, shape index: {}]
  %s6 = inlined_call_operand.vmem [shape: f32[1,128], index: 6, kind: input, shape index: {}]
  %s7 = inlined_call_operand.vmem [shape: f32[16,128], index: 7, kind: output, shape index: {}]
  %s8 = sld [smem:[#allocation0]]
  $region46: #{ppo_agent_forward.1} parent=0
    _
  %s10 = ssub.s32 1, %s8
  %s11 = scalar_select 0, %s10, %s8
  $region1: #{ppo_agent_forward.1} parent=0
    #allocation2 [shape = 'u8[32768]{0}', space=vmem, size = 0x8000, scoped, tag = 'input window, operand 3, single buffered']
    #allocation3 [shape = 's32[1]{0}', space=sflag, size = 0x4, scoped, tag = 'scoped memory for ppo_agent_forward.1']
    #allocation4 [shape = 'u8[32768]{0}', space=vmem, size = 0x8000, scoped, tag = 'input window, operand 5, single buffered']
    #allocation5 [shape = 's32[1]{0}', space=sflag, size = 0x4, scoped, tag = 'scoped memory for ppo_agent_forward.1']
    %12 = vsyncpa [#allocation3], 0
    %13 = vsyncpa [#allocation5], 0
    // Predicated region
    $region2: #{ppo_agent_forward.1} parent=1 // pred_check
      _
    $region3: #{ppo_agent_forward.1} parent=1 // pred_check_branch
      %15 = sbr.rel (0) target = $region5
    $region4: #{ppo_agent_forward.1} parent=1 // pred_region
      _
    $region5: #{ppo_agent_forward.1} parent=1 // pred_fallthru
      _
    // Predicated region
    $region6: #{ppo_agent_forward.1} parent=1 // pred_check
      _
    $region7: #{ppo_agent_forward.1} parent=1 // pred_check_branch
      %17 = sbr.rel (0) target = $region9
    $region8: #{ppo_agent_forward.1} parent=1 // pred_region
      _
    $region9: #{ppo_agent_forward.1} parent=1 // pred_fallthru
      _
    // Predicated region
    $region10: #{ppo_agent_forward.1} parent=1 // pred_check
      _
    $region11: #{ppo_agent_forward.1} parent=1 // pred_check_branch
      %19 = sbr.rel (0) target = $region13
    $region12: #{ppo_agent_forward.1} parent=1 // pred_region
      _
    $region13: #{ppo_agent_forward.1} parent=1 // pred_fallthru
      _
    // Predicated region
    $region14: #{ppo_agent_forward.1} parent=1 // pred_check
      _
    $region15: #{ppo_agent_forward.1} parent=1 // pred_check_branch
      %21 = sbr.rel (0) target = $region17
    $region16: #{ppo_agent_forward.1} parent=1 // pred_region
      %s23 = ssub.s32 1024, 1024
      %24 = vsyncadd [#allocation3], %s23
      %s25 = sshll.u32 [#allocation2], 4
      %s26 = int_to_ptr.vmem [resolvable:$true] %s25
      %31 = dma.hbm_to_vmem [thread:$0]  %s3, 1024, %s26, [#allocation3], 64, 64, 4
    $region17: #{ppo_agent_forward.1} parent=1 // pred_fallthru
      _
    // Predicated region
    $region18: #{ppo_agent_forward.1} parent=1 // pred_check
      _
    $region19: #{ppo_agent_forward.1} parent=1 // pred_check_branch
      %33 = sbr.rel (0) target = $region21
    $region20: #{ppo_agent_forward.1} parent=1 // pred_region
      _
    $region21: #{ppo_agent_forward.1} parent=1 // pred_fallthru
      _
    // Predicated region
    $region22: #{ppo_agent_forward.1} parent=1 // pred_check
      _
    $region23: #{ppo_agent_forward.1} parent=1 // pred_check_branch
      %35 = sbr.rel (0) target = $region25
    $region24: #{ppo_agent_forward.1} parent=1 // pred_region
      %s37 = ssub.s32 1024, 1024
      %38 = vsyncadd [#allocation5], %s37
      %s39 = sshll.u32 [#allocation4], 4
      %s40 = int_to_ptr.vmem [resolvable:$true] %s39
      %45 = dma.hbm_to_vmem [thread:$0]  %s5, 1024, %s40, [#allocation5], 64, 64, 4
    $region25: #{ppo_agent_forward.1} parent=1 // pred_fallthru
      _
    // Predicated region
    $region26: #{ppo_agent_forward.1} parent=1 // pred_check
      _
    $region27: #{ppo_agent_forward.1} parent=1 // pred_check_branch
      %47 = sbr.rel (0) target = $region29
    $region28: #{ppo_agent_forward.1} parent=1 // pred_region
      _
    $region29: #{ppo_agent_forward.1} parent=1 // pred_fallthru
      _
    // Predicated region
    $region30: #{ppo_agent_forward.1} parent=1 // pred_check
      _
    $region31: #{ppo_agent_forward.1} parent=1 // pred_check_branch
      %49 = sbr.rel (0) target = $region33
    $region32: #{ppo_agent_forward.1} parent=1 // pred_region
      %50 = dma.done [#allocation3], 1024
    $region33: #{ppo_agent_forward.1} parent=1 // pred_fallthru
      _
    // Predicated region
    $region34: #{ppo_agent_forward.1} parent=1 // pred_check
      _
    $region35: #{ppo_agent_forward.1} parent=1 // pred_check_branch
      %52 = sbr.rel (0) target = $region37
    $region36: #{ppo_agent_forward.1} parent=1 // pred_region
      %53 = dma.done [#allocation5], 1024
    $region37: #{ppo_agent_forward.1} parent=1 // pred_fallthru
      _
    %v55 = vld [vmem:[%s0] sm:$0xf]
    %v56 = vld [vmem:[%s0 + $0x4] sm:$0xf]
    %v57 = vld [vmem:[%s1] sm:$0xf]
    %v58 = vld [vmem:[%s1 + $0x4] sm:$0xf]
    %v59 = vld [vmem:[%s2] sm:$0x1]
    %v61 = vlaneseq
    %v62 = vshrl.u32 %v61, 7
    %v63 = vsub.s32 0, %v62
    %v64 = vrot.slane %v59, %v63
    %v68 = vunpack.c.l.b16 %v55
    %v69 = vunpack.c.l.b16 %v56
    %v70 = vpack.c.b16 %v69, %v68
    %v73 = vunpack.c.l.b16 %v57
    %v74 = vunpack.c.l.b16 %v58
    %v75 = vpack.c.b16 %v74, %v73
    %vm77 = vcmask 130048
    %v79 = vsel %vm77, %v70, 0
    %81 = vmatprep.subr.bf16.mxu0 0
    %82 = vmatpush1.bf16.msra.mxu0 0
    %83 = vmatprep.subr.bf16.mxu0 0
    %84 = vmatpush1.bf16.msra.mxu0 0
    %85 = vmatprep.subr.bf16.mxu0 0
    %86 = vmatpush1.bf16.msra.mxu0 0
    %87 = vmatprep.subr.bf16.mxu0 0
    %88 = vmatpush1.bf16.msra.mxu0 0
    %89 = vmatprep.subr.bf16.mxu0 0
    %90 = vmatpush1.bf16.msra.mxu0 0
    %91 = vmatprep.subr.bf16.mxu0 0
    %92 = vmatpush1.bf16.msra.mxu0 0
    %93 = vmatprep.subr.bf16.mxu0 0
    %94 = vmatpush1.bf16.msra.mxu0 0
    %95 = vmatprep.subr.bf16.mxu0 0
    %96 = vmatpush1.bf16.msra.mxu0 %v75
    %97 = vmatprep.subr.bf16.mxu0 0
    %98 = vmatpush2.bf16.msra.mxu0 0
    %99 = vmatprep.subr.bf16.mxu0 0
    %100 = vmatpush2.bf16.msra.mxu0 0
    %101 = vmatprep.subr.bf16.mxu0 0
    %102 = vmatpush2.bf16.msra.mxu0 0
    %103 = vmatprep.subr.bf16.mxu0 0
    %104 = vmatpush2.bf16.msra.mxu0 0
    %105 = vmatprep.subr.bf16.mxu0 0
    %106 = vmatpush2.bf16.msra.mxu0 0
    %107 = vmatprep.subr.bf16.mxu0 0
    %108 = vmatpush2.bf16.msra.mxu0 0
    %109 = vmatprep.subr.bf16.mxu0 0
    %110 = vmatpush2.bf16.msra.mxu0 0
    %111 = vmatprep.subr.bf16.mxu0 0
    %112 = vmatpush2.bf16.msra.mxu0 0
    %113 = vmatprep.mubr.bf16.mxu0 0
    %114 = vmatmul.mubr.bf16.gmra.mxu0 %v79
    %v115 = vpop.f32.mrf.mxu0
    %v116 = vadd.f32 %v64, %v115
    %v117 = vpop.f32.mrf.mxu0
    %v118 = vpop.f32.mrf.mxu0
    %v119 = vadd.f32 %v64, %v118
    %v120 = vpop.f32.mrf.mxu0
    %121 = vdwg.mxu0
    %v122 = vtanh.pop %v116
    %v123 = vtanh.pop %v119
    %v124 = vpack.c.bf16 %v123, %v122
    %v125 = vld [vmem:[#allocation2] sm:$0xf]
    %v126 = vld [vmem:[#allocation2 + $0x4] sm:$0xf]
    %v127 = vld [vmem:[#allocation2 + $0x8] sm:$0xf]
    %v128 = vld [vmem:[#allocation2 + $0xc] sm:$0xf]
    %v129 = vld [vmem:[#allocation2 + $0x10] sm:$0xf]
    %v130 = vld [vmem:[#allocation2 + $0x14] sm:$0xf]
    %v131 = vld [vmem:[#allocation2 + $0x18] sm:$0xf]
    %v132 = vld [vmem:[#allocation2 + $0x1c] sm:$0xf]
    %v133 = vld [vmem:[#allocation2 + $0x20] sm:$0xf]
    %v134 = vld [vmem:[#allocation2 + $0x24] sm:$0xf]
    %v135 = vld [vmem:[#allocation2 + $0x28] sm:$0xf]
    %v136 = vld [vmem:[#allocation2 + $0x2c] sm:$0xf]
    %v137 = vld [vmem:[#allocation2 + $0x30] sm:$0xf]
    %v138 = vld [vmem:[#allocation2 + $0x34] sm:$0xf]
    %v139 = vld [vmem:[#allocation2 + $0x38] sm:$0xf]
    %v140 = vld [vmem:[#allocation2 + $0x3c] sm:$0xf]
    %v141 = vld [vmem:[%s4] sm:$0x1]
    %v143 = vlaneseq
    %v144 = vshrl.u32 %v143, 7
    %v145 = vsub.s32 0, %v144
    %v146 = vrot.slane %v141, %v145
    %v164 = vunpack.c.l.b16 %v125
    %v165 = vunpack.c.l.b16 %v126
    %v166 = vunpack.c.l.b16 %v127
    %v167 = vunpack.c.l.b16 %v128
    %v168 = vunpack.c.l.b16 %v129
    %v169 = vunpack.c.l.b16 %v130
    %v170 = vunpack.c.l.b16 %v131
    %v171 = vunpack.c.l.b16 %v132
    %v172 = vunpack.c.l.b16 %v133
    %v173 = vunpack.c.l.b16 %v134
    %v174 = vunpack.c.l.b16 %v135
    %v175 = vunpack.c.l.b16 %v136
    %v176 = vunpack.c.l.b16 %v137
    %v177 = vunpack.c.l.b16 %v138
    %v178 = vunpack.c.l.b16 %v139
    %v179 = vunpack.c.l.b16 %v140
    %v180 = vpack.c.b16 %v165, %v164
    %v181 = vpack.c.b16 %v167, %v166
    %v182 = vpack.c.b16 %v169, %v168
    %v183 = vpack.c.b16 %v171, %v170
    %v184 = vpack.c.b16 %v173, %v172
    %v185 = vpack.c.b16 %v175, %v174
    %v186 = vpack.c.b16 %v177, %v176
    %v187 = vpack.c.b16 %v179, %v178
    %196 = vmatprep.subr.bf16.mxu0 0
    %197 = vmatpush1.bf16.msra.mxu0 %v187
    %198 = vmatprep.subr.bf16.mxu0 0
    %199 = vmatpush1.bf16.msra.mxu0 %v186
    %200 = vmatprep.subr.bf16.mxu0 0
    %201 = vmatpush1.bf16.msra.mxu0 %v185
    %202 = vmatprep.subr.bf16.mxu0 0
    %203 = vmatpush1.bf16.msra.mxu0 %v184
    %204 = vmatprep.subr.bf16.mxu0 0
    %205 = vmatpush1.bf16.msra.mxu0 %v183
    %206 = vmatprep.subr.bf16.mxu0 0
    %207 = vmatpush1.bf16.msra.mxu0 %v182
    %208 = vmatprep.subr.bf16.mxu0 0
    %209 = vmatpush1.bf16.msra.mxu0 %v181
    %210 = vmatprep.subr.bf16.mxu0 0
    %211 = vmatpush1.bf16.msra.mxu0 %v180
    %212 = vmatprep.subr.bf16.mxu0 0
    %213 = vmatpush2.bf16.msra.mxu0 0
    %214 = vmatprep.subr.bf16.mxu0 0
    %215 = vmatpush2.bf16.msra.mxu0 0
    %216 = vmatprep.subr.bf16.mxu0 0
    %217 = vmatpush2.bf16.msra.mxu0 0
    %218 = vmatprep.subr.bf16.mxu0 0
    %219 = vmatpush2.bf16.msra.mxu0 0
    %220 = vmatprep.subr.bf16.mxu0 0
    %221 = vmatpush2.bf16.msra.mxu0 0
    %222 = vmatprep.subr.bf16.mxu0 0
    %223 = vmatpush2.bf16.msra.mxu0 0
    %224 = vmatprep.subr.bf16.mxu0 0
    %225 = vmatpush2.bf16.msra.mxu0 0
    %226 = vmatprep.subr.bf16.mxu0 0
    %227 = vmatpush2.bf16.msra.mxu0 0
    %228 = vmatprep.mubr.bf16.mxu0 0
    %229 = vmatmul.mubr.bf16.gmra.mxu0 %v124
    %v230 = vpop.f32.mrf.mxu0
    %v231 = vadd.f32 %v146, %v230
    %v232 = vpop.f32.mrf.mxu0
    %v233 = vpop.f32.mrf.mxu0
    %v234 = vadd.f32 %v146, %v233
    %v235 = vpop.f32.mrf.mxu0
    %236 = vdwg.mxu0
    %v237 = vmax.f32 %v231, 0.0
    %v238 = vmax.f32 %v234, 0.0
    %v239 = vadd.f32 %v122, %v237
    %v240 = vadd.f32 %v123, %v238
    %v241 = vpack.c.bf16 %v240, %v239
    %v242 = vld [vmem:[#allocation4] sm:$0xf]
    %v243 = vld [vmem:[#allocation4 + $0x4] sm:$0xf]
    %v244 = vld [vmem:[#allocation4 + $0x8] sm:$0xf]
    %v245 = vld [vmem:[#allocation4 + $0xc] sm:$0xf]
    %v246 = vld [vmem:[#allocation4 + $0x10] sm:$0xf]
    %v247 = vld [vmem:[#allocation4 + $0x14] sm:$0xf]
    %v248 = vld [vmem:[#allocation4 + $0x18] sm:$0xf]
    %v249 = vld [vmem:[#allocation4 + $0x1c] sm:$0xf]
    %v250 = vld [vmem:[#allocation4 + $0x20] sm:$0xf]
    %v251 = vld [vmem:[#allocation4 + $0x24] sm:$0xf]
    %v252 = vld [vmem:[#allocation4 + $0x28] sm:$0xf]
    %v253 = vld [vmem:[#allocation4 + $0x2c] sm:$0xf]
    %v254 = vld [vmem:[#allocation4 + $0x30] sm:$0xf]
    %v255 = vld [vmem:[#allocation4 + $0x34] sm:$0xf]
    %v256 = vld [vmem:[#allocation4 + $0x38] sm:$0xf]
    %v257 = vld [vmem:[#allocation4 + $0x3c] sm:$0xf]
    %v258 = vld [vmem:[%s6] sm:$0x1]
    %v260 = vlaneseq
    %v261 = vshrl.u32 %v260, 7
    %v262 = vsub.s32 0, %v261
    %v263 = vrot.slane %v258, %v262
    %v281 = vunpack.c.l.b16 %v242
    %v282 = vunpack.c.l.b16 %v243
    %v283 = vunpack.c.l.b16 %v244
    %v284 = vunpack.c.l.b16 %v245
    %v285 = vunpack.c.l.b16 %v246
    %v286 = vunpack.c.l.b16 %v247
    %v287 = vunpack.c.l.b16 %v248
    %v288 = vunpack.c.l.b16 %v249
    %v289 = vunpack.c.l.b16 %v250
    %v290 = vunpack.c.l.b16 %v251
    %v291 = vunpack.c.l.b16 %v252
    %v292 = vunpack.c.l.b16 %v253
    %v293 = vunpack.c.l.b16 %v254
    %v294 = vunpack.c.l.b16 %v255
    %v295 = vunpack.c.l.b16 %v256
    %v296 = vunpack.c.l.b16 %v257
    %v297 = vpack.c.b16 %v282, %v281
    %v298 = vpack.c.b16 %v284, %v283
    %v299 = vpack.c.b16 %v286, %v285
    %v300 = vpack.c.b16 %v288, %v287
    %v301 = vpack.c.b16 %v290, %v289
    %v302 = vpack.c.b16 %v292, %v291
    %v303 = vpack.c.b16 %v294, %v293
    %v304 = vpack.c.b16 %v296, %v295
    %313 = vmatprep.subr.bf16.mxu0 0
    %314 = vmatpush1.bf16.msra.mxu0 %v304
    %315 = vmatprep.subr.bf16.mxu0 0
    %316 = vmatpush1.bf16.msra.mxu0 %v303
    %317 = vmatprep.subr.bf16.mxu0 0
    %318 = vmatpush1.bf16.msra.mxu0 %v302
    %319 = vmatprep.subr.bf16.mxu0 0
    %320 = vmatpush1.bf16.msra.mxu0 %v301
    %321 = vmatprep.subr.bf16.mxu0 0
    %322 = vmatpush1.bf16.msra.mxu0 %v300
    %323 = vmatprep.subr.bf16.mxu0 0
    %324 = vmatpush1.bf16.msra.mxu0 %v299
    %325 = vmatprep.subr.bf16.mxu0 0
    %326 = vmatpush1.bf16.msra.mxu0 %v298
    %327 = vmatprep.subr.bf16.mxu0 0
    %328 = vmatpush1.bf16.msra.mxu0 %v297
    %329 = vmatprep.subr.bf16.mxu0 0
    %330 = vmatpush2.bf16.msra.mxu0 0
    %331 = vmatprep.subr.bf16.mxu0 0
    %332 = vmatpush2.bf16.msra.mxu0 0
    %333 = vmatprep.subr.bf16.mxu0 0
    %334 = vmatpush2.bf16.msra.mxu0 0
    %335 = vmatprep.subr.bf16.mxu0 0
    %336 = vmatpush2.bf16.msra.mxu0 0
    %337 = vmatprep.subr.bf16.mxu0 0
    %338 = vmatpush2.bf16.msra.mxu0 0
    %339 = vmatprep.subr.bf16.mxu0 0
    %340 = vmatpush2.bf16.msra.mxu0 0
    %341 = vmatprep.subr.bf16.mxu0 0
    %342 = vmatpush2.bf16.msra.mxu0 0
    %343 = vmatprep.subr.bf16.mxu0 0
    %344 = vmatpush2.bf16.msra.mxu0 0
    %345 = vmatprep.mubr.bf16.mxu0 0
    %346 = vmatmul.mubr.bf16.gmra.mxu0 %v241
    %v347 = vpop.f32.mrf.mxu0
    %v348 = vadd.f32 %v263, %v347
    %v349 = vpop.f32.mrf.mxu0
    %v350 = vpop.f32.mrf.mxu0
    %v351 = vadd.f32 %v263, %v350
    %v352 = vpop.f32.mrf.mxu0
    %353 = vdwg.mxu0
    %v354 = vlaneseq
    %v355 = vand.u32 %v354, 127
    %vm356 = vcmp.ge.s32.totalorder %v355, 4
    %vm357 = vcmp.lt.s32.totalorder %v355, 8
    %vm358 = vmand %vm356, %vm357
    %v359 = vmax.f32 %v348, -5.0
    %v360 = vmax.f32 %v351, -5.0
    %v361 = vmin.f32 %v359, 2.0
    %v362 = vmin.f32 %v360, 2.0
    %v363 = vmul.f32 %v361, 1.442695
    %v364 = vpow.pop %v363
    %v365 = vmul.f32 %v362, 1.442695
    %v366 = vpow.pop %v365
    %v367 = vsel %vm358, %v364, %v348
    %v368 = vsel %vm358, %v366, %v351
    %369 = vst [vmem:[%s7] sm:$0xff] %v367
    %370 = vst [vmem:[%s7 + $0x8] sm:$0xff] %v368
    // Predicated region
    $region38: #{ppo_agent_forward.1} parent=1 // pred_check
      _
    $region39: #{ppo_agent_forward.1} parent=1 // pred_check_branch
      %372 = sbr.rel (0) target = $region41
    $region40: #{ppo_agent_forward.1} parent=1 // pred_region
      _
    $region41: #{ppo_agent_forward.1} parent=1 // pred_fallthru
      _
    // Predicated region
    $region42: #{ppo_agent_forward.1} parent=1 // pred_check
      _
    $region43: #{ppo_agent_forward.1} parent=1 // pred_check_branch
      %374 = sbr.rel (0) target = $region45
    $region44: #{ppo_agent_forward.1} parent=1 // pred_region
      _
    $region45: #{ppo_agent_forward.1} parent=1 // pred_fallthru
      _
    %375 = vsyncpa [#allocation3], 1
    %376 = vsyncpa [#allocation5], 1

</llo_original>
